<compile_context>
chip_gen: v6e
topology: v6e:2x2x1
jax: 0.10.0
libtpu: 0.0.40
codegen_flags: <defaults>
</compile_context>

<pallas_src>
import jax
import jax.numpy as jnp
from jax import lax
from jax.experimental import pallas as pl
from jax.experimental.pallas import tpu as pltpu


def _round_up(n, m):
    return ((n + m - 1) // m) * m


def _encoder_kernel(x_ref, w1_ref, b1_ref, wh_ref, bh_ref, out_ref):
    # On-chip f32 -> bf16 cast of the streamed x tile (VPU has slack; avoids a
    # separate XLA convert pass over x in HBM).
    x_bf = x_ref[...].astype(jnp.bfloat16)

    # fc1: bf16 operands, f32 accumulation on the MXU.
    h = jnp.dot(x_bf, w1_ref[...], preferred_element_type=jnp.float32)
    h = h + b1_ref[...]

    # Softplus matching torch.nn.Softplus defaults (beta=1, threshold=20), f32.
    # The min() clamp keeps the untaken exp branch from overflowing.
    h = jnp.where(h > 20.0, h, jnp.log1p(jnp.exp(jnp.minimum(h, 20.0))))

    # Fused heads: one (BM, H) @ (H, 2Z) dot producing [loc || log_scale].
    # bf16 operands (wh_ref is already bf16), f32 accumulate.
    heads = jnp.dot(h.astype(jnp.bfloat16), wh_ref[...],
                    preferred_element_type=jnp.float32) + bh_ref[...]

    # Apply exp only to the log_scale half (columns >= Z) via a lane mask.
    # NOTE: exp(loc) in the untaken branch may be +inf; jnp.where discards it
    # and no NaN is produced.  Do not "fix" this into a form that exps after
    # a select of -inf/0 placeholders.
    z = bh_ref.shape[-1] // 2
    col = lax.broadcasted_iota(jnp.int32, heads.shape, dimension=1)
    out_ref[...] = jnp.where(col < z, heads, jnp.exp(heads))


def encoder_forward(x, params):
    """x: any shape whose trailing elements flatten to data_size per row.
       params: w1 (D,H), b1 (1,H), w21 (H,Z), b21 (1,Z), w22 (H,Z), b22 (1,Z),
       all weights stored transposed as (in_features, out_features)."""
    D, H = params["w1"].shape
    Z = params["w21"].shape[1]

    # Stream x as f32; the kernel casts to bf16 on-chip.
    x2d = x.reshape(-1, D).astype(jnp.float32)
    B = x2d.shape[0]

    # Resident weights: tiny, pre-cast to bf16 once in the wrapper so the
    # kernel doesn't redo the cast every grid step.
    w1_bf = params["w1"].astype(jnp.bfloat16)                                # (D, H)
    w_heads = jnp.concatenate([params["w21"], params["w22"]], axis=1)        # (H, 2Z)
    w_heads = w_heads.astype(jnp.bfloat16)
    b_heads = jnp.concatenate([params["b21"], params["b22"]], axis=1)        # (1, 2Z) f32

    # Batch tile:
    #   * up to 2048 rows -> double-buffered f32 x tiles = 16 MiB, + ~0.4 MiB
    #     of outputs/weights, comfortably under the 32 MiB vmem limit set
    #     below on every generation (incl. v7x's 64 MiB physical VMEM).
    #   * at least ceil(B/2) (rounded to 16) so the grid has >= 2 steps for
    #     mid/large batches and v7x's two TensorCores both get work.
    #   * multiple of 16 so bf16 sublane packing and (8,128) tiling hold.
    BM = min(2048, _round_up(max(pl.cdiv(B, 2), 1), 16))
    grid = (pl.cdiv(B, BM),)   # ragged last block handled by Pallas (no jnp.pad)

    out = pl.pallas_call(
        _encoder_kernel,
        out_shape=jax.ShapeDtypeStruct((B, 2 * Z), jnp.float32),
        grid_spec=pltpu.PrefetchScalarGridSpec(
            num_scalar_prefetch=0,
            grid=grid,
            in_specs=[
                pl.BlockSpec((BM, D), lambda i: (i, 0)),      # x tile (streams, f32)
                pl.BlockSpec((D, H), lambda i: (0, 0)),       # w1 (resident, bf16)
                pl.BlockSpec((1, H), lambda i: (0, 0)),       # b1 (resident, f32)
                pl.BlockSpec((H, 2 * Z), lambda i: (0, 0)),   # fused head W (bf16)
                pl.BlockSpec((1, 2 * Z), lambda i: (0, 0)),   # fused head b (f32)
            ],
            out_specs=pl.BlockSpec((BM, 2 * Z), lambda i: (i, 0)),
        ),
        compiler_params=pltpu.CompilerParams(
            dimension_semantics=("parallel",),
            # Explicit limit: overrides v5e's 16 MiB scoped default, stays
            # inside v7x's 64 MiB physical VMEM.
            vmem_limit_bytes=32 * 1024 * 1024,
        ),
    )(x2d, w1_bf, params["b1"], w_heads, b_heads)

    z_loc = out[:, :Z]
    z_scale = out[:, Z:]
    return z_loc, z_scale


def init_params(key, data_size, z_dim, hidden_dim):
    """Deterministic init mimicking nn.Linear default (uniform +-1/sqrt(fan_in)).
       Weights stored transposed: (in_features, out_features)."""
    ks = jax.random.split(key, 6)

    def lin(kw, kb, fan_in, fan_out):
        bound = 1.0 / jnp.sqrt(fan_in)
        w = jax.random.uniform(kw, (fan_in, fan_out), jnp.float32, -bound, bound)
        b = jax.random.uniform(kb, (1, fan_out), jnp.float32, -bound, bound)
        return w, b

    w1, b1 = lin(ks[0], ks[1], data_size, hidden_dim)
    w21, b21 = lin(ks[2], ks[3], hidden_dim, z_dim)
    w22, b22 = lin(ks[4], ks[5], hidden_dim, z_dim)
    return {"w1": w1, "b1": b1, "w21": w21, "b21": b21, "w22": w22, "b22": b22}


if __name__ == "__main__":
    # Small shapes consistent with the module: image-like input flattened to data_size.
    B, C, Himg, Wimg = 2, 4, 16, 16
    data_size = C * Himg * Wimg          # 1024
    hidden_dim = 32
    z_dim = 8

    key = jax.random.PRNGKey(0)
    k_x, k_p = jax.random.split(key)
    x = jax.random.normal(k_x, (B, C, Himg, Wimg), jnp.float32)   # NCHW input
    params = init_params(k_p, data_size, z_dim, hidden_dim)

    z_loc, z_scale = encoder_forward(x, params)
    jax.block_until_ready((z_loc, z_scale))

    # Reference in plain JAX, using the same bf16-operand / f32-accumulate
    # matmuls the kernel performs (so only reduction-order differences remain).
    # NOTE: the bf16 contraction is a deliberate trade vs f32 torch parity.
    x2d = x.reshape(-1, data_size)
    h_lin = jnp.dot(x2d.astype(jnp.bfloat16), params["w1"].astype(jnp.bfloat16),
                    preferred_element_type=jnp.float32) + params["b1"]
    h_ref = jnp.where(h_lin > 20.0, h_lin,
                      jnp.log1p(jnp.exp(jnp.minimum(h_lin, 20.0))))
    h_bf = h_ref.astype(jnp.bfloat16)
    loc_ref = jnp.dot(h_bf, params["w21"].astype(jnp.bfloat16),
                      preferred_element_type=jnp.float32) + params["b21"]
    scale_ref = jnp.exp(jnp.dot(h_bf, params["w22"].astype(jnp.bfloat16),
                                preferred_element_type=jnp.float32) + params["b22"])

    assert z_loc.shape == (B, z_dim) and z_scale.shape == (B, z_dim)
    assert jnp.allclose(z_loc, loc_ref, atol=2e-2, rtol=2e-2)
    assert jnp.allclose(z_scale, scale_ref, atol=2e-2, rtol=2e-2)

    print("KERNEL_OK")
</pallas_src>

<mosaic_0001>
module attributes {stable_mosaic.version = 11 : i64} {
  func.func @_encoder_kernel(%arg0: i32, %arg1: memref<16x1024xf32, #tpu.memory_space<vmem>>, %arg2: memref<1024x32xbf16, #tpu.memory_space<vmem>>, %arg3: memref<1x32xf32, #tpu.memory_space<vmem>>, %arg4: memref<32x16xbf16, #tpu.memory_space<vmem>>, %arg5: memref<1x16xf32, #tpu.memory_space<vmem>>, %arg6: memref<16x16xf32, #tpu.memory_space<vmem>>) attributes {dimension_semantics = [#tpu.dimension_semantics<parallel>], iteration_bounds = array<i64: 1>, scalar_prefetch = 0 : i64, scratch_operands = 0 : i64, tpu.core_type = #tpu.core_type<tc>, window_params = [{transform_indices = @transform_0, window_bounds = array<i64: 16, 1024>}, {pipeline_mode = #tpu.pipeline_mode<synchronous>, transform_indices = @transform_1, window_bounds = array<i64: 1024, 32>}, {pipeline_mode = #tpu.pipeline_mode<synchronous>, transform_indices = @transform_2, window_bounds = array<i64: 1, 32>}, {pipeline_mode = #tpu.pipeline_mode<synchronous>, transform_indices = @transform_3, window_bounds = array<i64: 32, 16>}, {pipeline_mode = #tpu.pipeline_mode<synchronous>, transform_indices = @transform_4, window_bounds = array<i64: 1, 16>}, {transform_indices = @transform_5, window_bounds = array<i64: 16, 16>}]} {
    %c0 = arith.constant 0 : index
    %c0_0 = arith.constant 0 : index
    %0 = vector.load %arg1[%c0, %c0_0] : memref<16x1024xf32, #tpu.memory_space<vmem>>, vector<16x1024xf32>
    %1 = arith.truncf %0 : vector<16x1024xf32> to vector<16x1024xbf16>
    %c0_1 = arith.constant 0 : index
    %c0_2 = arith.constant 0 : index
    %2 = vector.load %arg2[%c0_1, %c0_2] : memref<1024x32xbf16, #tpu.memory_space<vmem>>, vector<1024x32xbf16>
    %cst = arith.constant dense<0.000000e+00> : vector<16x32xf32>
    %3 = tpu.matmul %1, %2, %cst {dimension_numbers = #tpu.dot_dimension_numbers<[1], [0], [0], [1], [0, 0, 1, 1], [], []>} : vector<16x1024xbf16>, vector<1024x32xbf16>, vector<16x32xf32> -> vector<16x32xf32>
    %c0_3 = arith.constant 0 : index
    %c0_4 = arith.constant 0 : index
    %4 = vector.load %arg3[%c0_3, %c0_4] : memref<1x32xf32, #tpu.memory_space<vmem>>, vector<1x32xf32>
    %5 = vector.broadcast %4 : vector<1x32xf32> to vector<16x32xf32>
    %6 = arith.addf %3, %5 : vector<16x32xf32>
    %cst_5 = arith.constant 2.000000e+01 : f32
    %7 = vector.broadcast %cst_5 : f32 to vector<16x32xf32>
    %8 = arith.cmpf ogt, %6, %7 : vector<16x32xf32>
    %cst_6 = arith.constant 2.000000e+01 : f32
    %9 = vector.broadcast %cst_6 : f32 to vector<16x32xf32>
    %10 = arith.minimumf %6, %9 : vector<16x32xf32>
    %11 = math.exp %10 : vector<16x32xf32>
    %12 = math.log1p %11 : vector<16x32xf32>
    %13 = arith.select %8, %6, %12 : vector<16x32xi1>, vector<16x32xf32>
    %14 = arith.truncf %13 : vector<16x32xf32> to vector<16x32xbf16>
    %c0_7 = arith.constant 0 : index
    %c0_8 = arith.constant 0 : index
    %15 = vector.load %arg4[%c0_7, %c0_8] : memref<32x16xbf16, #tpu.memory_space<vmem>>, vector<32x16xbf16>
    %cst_9 = arith.constant dense<0.000000e+00> : vector<16x16xf32>
    %16 = tpu.matmul %14, %15, %cst_9 {dimension_numbers = #tpu.dot_dimension_numbers<[1], [0], [0], [1], [0, 0, 1, 1], [], []>} : vector<16x32xbf16>, vector<32x16xbf16>, vector<16x16xf32> -> vector<16x16xf32>
    %c0_10 = arith.constant 0 : index
    %c0_11 = arith.constant 0 : index
    %17 = vector.load %arg5[%c0_10, %c0_11] : memref<1x16xf32, #tpu.memory_space<vmem>>, vector<1x16xf32>
    %18 = vector.broadcast %17 : vector<1x16xf32> to vector<16x16xf32>
    %19 = arith.addf %16, %18 : vector<16x16xf32>
    %20 = tpu.iota {dimensions = array<i32: 1>} : vector<16x16xi32>
    %c8_i32 = arith.constant 8 : i32
    %21 = vector.broadcast %c8_i32 : i32 to vector<16x16xi32>
    %22 = arith.cmpi slt, %20, %21 : vector<16x16xi32>
    %23 = math.exp %19 : vector<16x16xf32>
    %24 = arith.select %22, %19, %23 : vector<16x16xi1>, vector<16x16xf32>
    %c0_12 = arith.constant 0 : index
    %c0_13 = arith.constant 0 : index
    %25 = vector.load %arg6[%c0_12, %c0_13] : memref<16x16xf32, #tpu.memory_space<vmem>>, vector<16x16xf32>
    tpu.vector_store %arg6[%c0_12, %c0_13], %24 {strides = array<i32>} : memref<16x16xf32, #tpu.memory_space<vmem>>, vector<16x16xf32>,
    return
  }
  func.func @transform_0(%arg0: i32) -> (i32, i32) {
    %c0_i32 = arith.constant 0 : i32
    %c0_i32_0 = arith.constant 0 : i32
    return %arg0, %c0_i32 : i32, i32
  }
  func.func @transform_1(%arg0: i32) -> (i32, i32) {
    %c0_i32 = arith.constant 0 : i32
    %c0_i32_0 = arith.constant 0 : i32
    %c0_i32_1 = arith.constant 0 : i32
    return %c0_i32, %c0_i32_0 : i32, i32
  }
  func.func @transform_2(%arg0: i32) -> (i32, i32) {
    %c0_i32 = arith.constant 0 : i32
    %c0_i32_0 = arith.constant 0 : i32
    %c0_i32_1 = arith.constant 0 : i32
    return %c0_i32, %c0_i32_0 : i32, i32
  }
  func.func @transform_3(%arg0: i32) -> (i32, i32) {
    %c0_i32 = arith.constant 0 : i32
    %c0_i32_0 = arith.constant 0 : i32
    %c0_i32_1 = arith.constant 0 : i32
    return %c0_i32, %c0_i32_0 : i32, i32
  }
  func.func @transform_4(%arg0: i32) -> (i32, i32) {
    %c0_i32 = arith.constant 0 : i32
    %c0_i32_0 = arith.constant 0 : i32
    %c0_i32_1 = arith.constant 0 : i32
    return %c0_i32, %c0_i32_0 : i32, i32
  }
  func.func @transform_5(%arg0: i32) -> (i32, i32) {
    %c0_i32 = arith.constant 0 : i32
    %c0_i32_0 = arith.constant 0 : i32
    return %arg0, %c0_i32 : i32, i32
  }
}

</mosaic_0001>

<llo_original>
// kernel: tpu_custom_call.1
$region0: #{tpu_custom_call.1}
  #allocation0 [shape = 'u32[]', space=smem, size = 0x4, offset = 0x4, fixed_abs, tag = 'smem constant byte address 0x4 - core index']
  #allocation1 [shape = 'u32[144,128]{1,0:T(1,128)}', space=vmem, size = 0x12000, scoped, tag = 'internal scratch']
  %s0 = inlined_call_operand.vmem [shape: f32[2,1024], index: 0, kind: input, shape index: {}]
  %s1 = inlined_call_operand.vmem [shape: bf16[1024,32], index: 1, kind: input, shape index: {}]
  %s2 = inlined_call_operand.vmem [shape: f32[1,32], index: 2, kind: input, shape index: {}]
  %s3 = inlined_call_operand.vmem [shape: bf16[32,16], index: 3, kind: input, shape index: {}]
  %s4 = inlined_call_operand.vmem [shape: f32[1,16], index: 4, kind: input, shape index: {}]
  %s5 = inlined_call_operand.hbm [shape: f32[2,16], index: 5, kind: output, shape index: {}]
  %s6 = sld [smem:[#allocation0]]
  $region30: #{tpu_custom_call.1} parent=0
    _
  %s8 = ssub.s32 1, %s6
  %s9 = scalar_select 0, %s8, %s6
  $region1: #{tpu_custom_call.1} parent=0
    #allocation2 [shape = 'u8[8192]{0}', space=vmem, size = 0x2000, scoped, tag = 'output window, operand 0, single buffered']
    #allocation3 [shape = 's32[1]{0}', space=sflag, size = 0x4, scoped, tag = 'scoped memory for tpu_custom_call.1']
    %10 = vsyncpa [#allocation3], 0
    // Predicated region
    $region2: #{tpu_custom_call.1} parent=1 // pred_check
      _
    $region3: #{tpu_custom_call.1} parent=1 // pred_check_branch
      %12 = sbr.rel (0) target = $region5
    $region4: #{tpu_custom_call.1} parent=1 // pred_region
      _
    $region5: #{tpu_custom_call.1} parent=1 // pred_fallthru
      _
    // Predicated region
    $region6: #{tpu_custom_call.1} parent=1 // pred_check
      _
    $region7: #{tpu_custom_call.1} parent=1 // pred_check_branch
      %14 = sbr.rel (0) target = $region9
    $region8: #{tpu_custom_call.1} parent=1 // pred_region
      _
    $region9: #{tpu_custom_call.1} parent=1 // pred_fallthru
      _
    // Predicated region
    $region10: #{tpu_custom_call.1} parent=1 // pred_check
      _
    $region11: #{tpu_custom_call.1} parent=1 // pred_check_branch
      %16 = sbr.rel (0) target = $region13
    $region12: #{tpu_custom_call.1} parent=1 // pred_region
      _
    $region13: #{tpu_custom_call.1} parent=1 // pred_fallthru
      _
    // Predicated region
    $region14: #{tpu_custom_call.1} parent=1 // pred_check
      _
    $region15: #{tpu_custom_call.1} parent=1 // pred_check_branch
      %18 = sbr.rel (0) target = $region17
    $region16: #{tpu_custom_call.1} parent=1 // pred_region
      _
    $region17: #{tpu_custom_call.1} parent=1 // pred_fallthru
      _
    // Predicated region
    $region18: #{tpu_custom_call.1} parent=1 // pred_check
      _
    $region19: #{tpu_custom_call.1} parent=1 // pred_check_branch
      %20 = sbr.rel (0) target = $region21
    $region20: #{tpu_custom_call.1} parent=1 // pred_region
      _
    $region21: #{tpu_custom_call.1} parent=1 // pred_fallthru
      _
    %v22 = vld [vmem:[%s0] sm:$0xff]
    %v23 = vld [vmem:[%s0 + $0x8] sm:$0xff]
    %v24 = vld [vmem:[%s0 + $0x10] sm:$0xff]
    %v25 = vld [vmem:[%s0 + $0x18] sm:$0xff]
    %v26 = vld [vmem:[%s0 + $0x20] sm:$0xff]
    %v27 = vld [vmem:[%s0 + $0x28] sm:$0xff]
    %v28 = vld [vmem:[%s0 + $0x30] sm:$0xff]
    %v29 = vld [vmem:[%s0 + $0x38] sm:$0xff]
    %v30 = vld [vmem:[%s0 + $0x40] sm:$0xff]
    %v31 = vld [vmem:[%s0 + $0x48] sm:$0xff]
    %v32 = vld [vmem:[%s0 + $0x50] sm:$0xff]
    %v33 = vld [vmem:[%s0 + $0x58] sm:$0xff]
    %v34 = vld [vmem:[%s0 + $0x60] sm:$0xff]
    %v35 = vld [vmem:[%s0 + $0x68] sm:$0xff]
    %v36 = vld [vmem:[%s0 + $0x70] sm:$0xff]
    %v37 = vld [vmem:[%s0 + $0x78] sm:$0xff]
    %v54 = vcombine.low %v22, %v24
    %v55 = vcombine.high %v22, %v24
    %v56 = vcombine.low %v26, %v28
    %v57 = vcombine.high %v26, %v28
    %v59 = vunpack.c.l.s4 1983009808
    %v60 = vunpack.c.0.s8 %v59
    %v61 = vlaneseq
    %v62 = vshrl.u32 %v61, 7
    %v63 = vsub.s32 %v60, %v62
    %v64 = vrot.slane %v54, %v63
    %v66 = vunpack.c.l.s4 1983009808
    %v67 = vunpack.c.0.s8 %v66
    %v68 = vlaneseq
    %v69 = vshrl.u32 %v68, 7
    %v70 = vsub.s32 %v67, %v69
    %v71 = vrot.slane %v55, %v70
    %v73 = vunpack.c.l.s4 1983009808
    %v74 = vunpack.c.0.s8 %v73
    %v75 = vlaneseq
    %v76 = vshrl.u32 %v75, 7
    %v77 = vsub.s32 %v74, %v76
    %v78 = vrot.slane %v56, %v77
    %v80 = vunpack.c.l.s4 1983009808
    %v81 = vunpack.c.0.s8 %v80
    %v82 = vlaneseq
    %v83 = vshrl.u32 %v82, 7
    %v84 = vsub.s32 %v81, %v83
    %v85 = vrot.slane %v57, %v84
    %v86 = vcombine.low %v64, %v78
    %v87 = vcombine.high %v64, %v78
    %v88 = vcombine.low %v71, %v85
    %v89 = vcombine.high %v71, %v85
    %v90 = vcombine.low %v23, %v25
    %v91 = vcombine.high %v23, %v25
    %v92 = vcombine.low %v27, %v29
    %v93 = vcombine.high %v27, %v29
    %v95 = vunpack.c.l.s4 1983009808
    %v96 = vunpack.c.0.s8 %v95
    %v97 = vlaneseq
    %v98 = vshrl.u32 %v97, 7
    %v99 = vsub.s32 %v96, %v98
    %v100 = vrot.slane %v90, %v99
    %v102 = vunpack.c.l.s4 1983009808
    %v103 = vunpack.c.0.s8 %v102
    %v104 = vlaneseq
    %v105 = vshrl.u32 %v104, 7
    %v106 = vsub.s32 %v103, %v105
    %v107 = vrot.slane %v91, %v106
    %v109 = vunpack.c.l.s4 1983009808
    %v110 = vunpack.c.0.s8 %v109
    %v111 = vlaneseq
    %v112 = vshrl.u32 %v111, 7
    %v113 = vsub.s32 %v110, %v112
    %v114 = vrot.slane %v92, %v113
    %v116 = vunpack.c.l.s4 1983009808
    %v117 = vunpack.c.0.s8 %v116
    %v118 = vlaneseq
    %v119 = vshrl.u32 %v118, 7
    %v120 = vsub.s32 %v117, %v119
    %v121 = vrot.slane %v93, %v120
    %v122 = vcombine.low %v100, %v114
    %v123 = vcombine.high %v100, %v114
    %v124 = vcombine.low %v107, %v121
    %v125 = vcombine.high %v107, %v121
    %v126 = vcombine.low %v30, %v32
    %v127 = vcombine.high %v30, %v32
    %v128 = vcombine.low %v34, %v36
    %v129 = vcombine.high %v34, %v36
    %v131 = vunpack.c.l.s4 1983009808
    %v132 = vunpack.c.0.s8 %v131
    %v133 = vlaneseq
    %v134 = vshrl.u32 %v133, 7
    %v135 = vsub.s32 %v132, %v134
    %v136 = vrot.slane %v126, %v135
    %v138 = vunpack.c.l.s4 1983009808
    %v139 = vunpack.c.0.s8 %v138
    %v140 = vlaneseq
    %v141 = vshrl.u32 %v140, 7
    %v142 = vsub.s32 %v139, %v141
    %v143 = vrot.slane %v127, %v142
    %v145 = vunpack.c.l.s4 1983009808
    %v146 = vunpack.c.0.s8 %v145
    %v147 = vlaneseq
    %v148 = vshrl.u32 %v147, 7
    %v149 = vsub.s32 %v146, %v148
    %v150 = vrot.slane %v128, %v149
    %v152 = vunpack.c.l.s4 1983009808
    %v153 = vunpack.c.0.s8 %v152
    %v154 = vlaneseq
    %v155 = vshrl.u32 %v154, 7
    %v156 = vsub.s32 %v153, %v155
    %v157 = vrot.slane %v129, %v156
    %v158 = vcombine.low %v136, %v150
    %v159 = vcombine.high %v136, %v150
    %v160 = vcombine.low %v143, %v157
    %v161 = vcombine.high %v143, %v157
    %v162 = vcombine.low %v31, %v33
    %v163 = vcombine.high %v31, %v33
    %v164 = vcombine.low %v35, %v37
    %v165 = vcombine.high %v35, %v37
    %v167 = vunpack.c.l.s4 1983009808
    %v168 = vunpack.c.0.s8 %v167
    %v169 = vlaneseq
    %v170 = vshrl.u32 %v169, 7
    %v171 = vsub.s32 %v168, %v170
    %v172 = vrot.slane %v162, %v171
    %v174 = vunpack.c.l.s4 1983009808
    %v175 = vunpack.c.0.s8 %v174
    %v176 = vlaneseq
    %v177 = vshrl.u32 %v176, 7
    %v178 = vsub.s32 %v175, %v177
    %v179 = vrot.slane %v163, %v178
    %v181 = vunpack.c.l.s4 1983009808
    %v182 = vunpack.c.0.s8 %v181
    %v183 = vlaneseq
    %v184 = vshrl.u32 %v183, 7
    %v185 = vsub.s32 %v182, %v184
    %v186 = vrot.slane %v164, %v185
    %v188 = vunpack.c.l.s4 1983009808
    %v189 = vunpack.c.0.s8 %v188
    %v190 = vlaneseq
    %v191 = vshrl.u32 %v190, 7
    %v192 = vsub.s32 %v189, %v191
    %v193 = vrot.slane %v165, %v192
    %v194 = vcombine.low %v172, %v186
    %v195 = vcombine.high %v172, %v186
    %v196 = vcombine.low %v179, %v193
    %v197 = vcombine.high %v179, %v193
    %v214 = vpack.c.bf16 %v158, %v86
    %v215 = vpack.c.bf16 %v159, %v87
    %v216 = vpack.c.bf16 %v160, %v88
    %v217 = vpack.c.bf16 %v161, %v89
    %v218 = vpack.c.bf16 %v194, %v122
    %v219 = vpack.c.bf16 %v195, %v123
    %v220 = vpack.c.bf16 %v196, %v124
    %v221 = vpack.c.bf16 %v197, %v125
    %v222 = vld [vmem:[%s1] sm:$0xf]
    %v223 = vld [vmem:[%s1 + $0x4] sm:$0xf]
    %v224 = vld [vmem:[%s1 + $0x8] sm:$0xf]
    %v225 = vld [vmem:[%s1 + $0xc] sm:$0xf]
    %v226 = vld [vmem:[%s1 + $0x10] sm:$0xf]
    %v227 = vld [vmem:[%s1 + $0x14] sm:$0xf]
    %v228 = vld [vmem:[%s1 + $0x18] sm:$0xf]
    %v229 = vld [vmem:[%s1 + $0x1c] sm:$0xf]
    %v230 = vld [vmem:[%s1 + $0x20] sm:$0xf]
    %v231 = vld [vmem:[%s1 + $0x24] sm:$0xf]
    %v232 = vld [vmem:[%s1 + $0x28] sm:$0xf]
    %v233 = vld [vmem:[%s1 + $0x2c] sm:$0xf]
    %v234 = vld [vmem:[%s1 + $0x30] sm:$0xf]
    %v235 = vld [vmem:[%s1 + $0x34] sm:$0xf]
    %v236 = vld [vmem:[%s1 + $0x38] sm:$0xf]
    %v237 = vld [vmem:[%s1 + $0x3c] sm:$0xf]
    %v238 = vld [vmem:[%s1 + $0x40] sm:$0xf]
    %v239 = vld [vmem:[%s1 + $0x44] sm:$0xf]
    %v240 = vld [vmem:[%s1 + $0x48] sm:$0xf]
    %v241 = vld [vmem:[%s1 + $0x4c] sm:$0xf]
    %v242 = vld [vmem:[%s1 + $0x50] sm:$0xf]
    %v243 = vld [vmem:[%s1 + $0x54] sm:$0xf]
    %v244 = vld [vmem:[%s1 + $0x58] sm:$0xf]
    %v245 = vld [vmem:[%s1 + $0x5c] sm:$0xf]
    %v246 = vld [vmem:[%s1 + $0x60] sm:$0xf]
    %v247 = vld [vmem:[%s1 + $0x64] sm:$0xf]
    %v248 = vld [vmem:[%s1 + $0x68] sm:$0xf]
    %v249 = vld [vmem:[%s1 + $0x6c] sm:$0xf]
    %v250 = vld [vmem:[%s1 + $0x70] sm:$0xf]
    %v251 = vld [vmem:[%s1 + $0x74] sm:$0xf]
    %v252 = vld [vmem:[%s1 + $0x78] sm:$0xf]
    %v253 = vld [vmem:[%s1 + $0x7c] sm:$0xf]
    %v254 = vld [vmem:[%s1 + $0x80] sm:$0xf]
    %v255 = vld [vmem:[%s1 + $0x84] sm:$0xf]
    %v256 = vld [vmem:[%s1 + $0x88] sm:$0xf]
    %v257 = vld [vmem:[%s1 + $0x8c] sm:$0xf]
    %v258 = vld [vmem:[%s1 + $0x90] sm:$0xf]
    %v259 = vld [vmem:[%s1 + $0x94] sm:$0xf]
    %v260 = vld [vmem:[%s1 + $0x98] sm:$0xf]
    %v261 = vld [vmem:[%s1 + $0x9c] sm:$0xf]
    %v262 = vld [vmem:[%s1 + $0xa0] sm:$0xf]
    %v263 = vld [vmem:[%s1 + $0xa4] sm:$0xf]
    %v264 = vld [vmem:[%s1 + $0xa8] sm:$0xf]
    %v265 = vld [vmem:[%s1 + $0xac] sm:$0xf]
    %v266 = vld [vmem:[%s1 + $0xb0] sm:$0xf]
    %v267 = vld [vmem:[%s1 + $0xb4] sm:$0xf]
    %v268 = vld [vmem:[%s1 + $0xb8] sm:$0xf]
    %v269 = vld [vmem:[%s1 + $0xbc] sm:$0xf]
    %v270 = vld [vmem:[%s1 + $0xc0] sm:$0xf]
    %v271 = vld [vmem:[%s1 + $0xc4] sm:$0xf]
    %v272 = vld [vmem:[%s1 + $0xc8] sm:$0xf]
    %v273 = vld [vmem:[%s1 + $0xcc] sm:$0xf]
    %v274 = vld [vmem:[%s1 + $0xd0] sm:$0xf]
    %v275 = vld [vmem:[%s1 + $0xd4] sm:$0xf]
    %v276 = vld [vmem:[%s1 + $0xd8] sm:$0xf]
    %v277 = vld [vmem:[%s1 + $0xdc] sm:$0xf]
    %v278 = vld [vmem:[%s1 + $0xe0] sm:$0xf]
    %v279 = vld [vmem:[%s1 + $0xe4] sm:$0xf]
    %v280 = vld [vmem:[%s1 + $0xe8] sm:$0xf]
    %v281 = vld [vmem:[%s1 + $0xec] sm:$0xf]
    %v282 = vld [vmem:[%s1 + $0xf0] sm:$0xf]
    %v283 = vld [vmem:[%s1 + $0xf4] sm:$0xf]
    %v284 = vld [vmem:[%s1 + $0xf8] sm:$0xf]
    %v285 = vld [vmem:[%s1 + $0xfc] sm:$0xf]
    %v286 = vld [vmem:[%s1 + $0x100] sm:$0xf]
    %v287 = vld [vmem:[%s1 + $0x104] sm:$0xf]
    %v288 = vld [vmem:[%s1 + $0x108] sm:$0xf]
    %v289 = vld [vmem:[%s1 + $0x10c] sm:$0xf]
    %v290 = vld [vmem:[%s1 + $0x110] sm:$0xf]
    %v291 = vld [vmem:[%s1 + $0x114] sm:$0xf]
    %v292 = vld [vmem:[%s1 + $0x118] sm:$0xf]
    %v293 = vld [vmem:[%s1 + $0x11c] sm:$0xf]
    %v294 = vld [vmem:[%s1 + $0x120] sm:$0xf]
    %v295 = vld [vmem:[%s1 + $0x124] sm:$0xf]
    %v296 = vld [vmem:[%s1 + $0x128] sm:$0xf]
    %v297 = vld [vmem:[%s1 + $0x12c] sm:$0xf]
    %v298 = vld [vmem:[%s1 + $0x130] sm:$0xf]
    %v299 = vld [vmem:[%s1 + $0x134] sm:$0xf]
    %v300 = vld [vmem:[%s1 + $0x138] sm:$0xf]
    %v301 = vld [vmem:[%s1 + $0x13c] sm:$0xf]
    %v302 = vld [vmem:[%s1 + $0x140] sm:$0xf]
    %v303 = vld [vmem:[%s1 + $0x144] sm:$0xf]
    %v304 = vld [vmem:[%s1 + $0x148] sm:$0xf]
    %v305 = vld [vmem:[%s1 + $0x14c] sm:$0xf]
    %v306 = vld [vmem:[%s1 + $0x150] sm:$0xf]
    %v307 = vld [vmem:[%s1 + $0x154] sm:$0xf]
    %v308 = vld [vmem:[%s1 + $0x158] sm:$0xf]
    %v309 = vld [vmem:[%s1 + $0x15c] sm:$0xf]
    %v310 = vld [vmem:[%s1 + $0x160] sm:$0xf]
    %v311 = vld [vmem:[%s1 + $0x164] sm:$0xf]
    %v312 = vld [vmem:[%s1 + $0x168] sm:$0xf]
    %v313 = vld [vmem:[%s1 + $0x16c] sm:$0xf]
    %v314 = vld [vmem:[%s1 + $0x170] sm:$0xf]
    %v315 = vld [vmem:[%s1 + $0x174] sm:$0xf]
    %v316 = vld [vmem:[%s1 + $0x178] sm:$0xf]
    %v317 = vld [vmem:[%s1 + $0x17c] sm:$0xf]
    %v318 = vld [vmem:[%s1 + $0x180] sm:$0xf]
    %v319 = vld [vmem:[%s1 + $0x184] sm:$0xf]
    %v320 = vld [vmem:[%s1 + $0x188] sm:$0xf]
    %v321 = vld [vmem:[%s1 + $0x18c] sm:$0xf]
    %v322 = vld [vmem:[%s1 + $0x190] sm:$0xf]
    %v323 = vld [vmem:[%s1 + $0x194] sm:$0xf]
    %v324 = vld [vmem:[%s1 + $0x198] sm:$0xf]
    %v325 = vld [vmem:[%s1 + $0x19c] sm:$0xf]
    %v326 = vld [vmem:[%s1 + $0x1a0] sm:$0xf]
    %v327 = vld [vmem:[%s1 + $0x1a4] sm:$0xf]
    %v328 = vld [vmem:[%s1 + $0x1a8] sm:$0xf]
    %v329 = vld [vmem:[%s1 + $0x1ac] sm:$0xf]
    %v330 = vld [vmem:[%s1 + $0x1b0] sm:$0xf]
    %v331 = vld [vmem:[%s1 + $0x1b4] sm:$0xf]
    %v332 = vld [vmem:[%s1 + $0x1b8] sm:$0xf]
    %v333 = vld [vmem:[%s1 + $0x1bc] sm:$0xf]
    %v334 = vld [vmem:[%s1 + $0x1c0] sm:$0xf]
    %v335 = vld [vmem:[%s1 + $0x1c4] sm:$0xf]
    %v336 = vld [vmem:[%s1 + $0x1c8] sm:$0xf]
    %v337 = vld [vmem:[%s1 + $0x1cc] sm:$0xf]
    %v338 = vld [vmem:[%s1 + $0x1d0] sm:$0xf]
    %v339 = vld [vmem:[%s1 + $0x1d4] sm:$0xf]
    %v340 = vld [vmem:[%s1 + $0x1d8] sm:$0xf]
    %v341 = vld [vmem:[%s1 + $0x1dc] sm:$0xf]
    %v342 = vld [vmem:[%s1 + $0x1e0] sm:$0xf]
    %v343 = vld [vmem:[%s1 + $0x1e4] sm:$0xf]
    %v344 = vld [vmem:[%s1 + $0x1e8] sm:$0xf]
    %v345 = vld [vmem:[%s1 + $0x1ec] sm:$0xf]
    %v346 = vld [vmem:[%s1 + $0x1f0] sm:$0xf]
    %v347 = vld [vmem:[%s1 + $0x1f4] sm:$0xf]
    %v348 = vld [vmem:[%s1 + $0x1f8] sm:$0xf]
    %v349 = vld [vmem:[%s1 + $0x1fc] sm:$0xf]
    %v350 = vld [vmem:[%s2] sm:$0x1]
    %v352 = vlaneseq
    %v353 = vshrl.u32 %v352, 7
    %v354 = vsub.s32 0, %v353
    %v355 = vrot.slane %v350, %v354
    %v485 = vunpack.c.l.b16 %v222
    %v486 = vunpack.c.l.b16 %v223
    %v487 = vunpack.c.l.b16 %v224
    %v488 = vunpack.c.l.b16 %v225
    %v489 = vunpack.c.l.b16 %v226
    %v490 = vunpack.c.l.b16 %v227
    %v491 = vunpack.c.l.b16 %v228
    %v492 = vunpack.c.l.b16 %v229
    %v493 = vunpack.c.l.b16 %v230
    %v494 = vunpack.c.l.b16 %v231
    %v495 = vunpack.c.l.b16 %v232
    %v496 = vunpack.c.l.b16 %v233
    %v497 = vunpack.c.l.b16 %v234
    %v498 = vunpack.c.l.b16 %v235
    %v499 = vunpack.c.l.b16 %v236
    %v500 = vunpack.c.l.b16 %v237
    %v501 = vunpack.c.l.b16 %v238
    %v502 = vunpack.c.l.b16 %v239
    %v503 = vunpack.c.l.b16 %v240
    %v504 = vunpack.c.l.b16 %v241
    %v505 = vunpack.c.l.b16 %v242
    %v506 = vunpack.c.l.b16 %v243
    %v507 = vunpack.c.l.b16 %v244
    %v508 = vunpack.c.l.b16 %v245
    %v509 = vunpack.c.l.b16 %v246
    %v510 = vunpack.c.l.b16 %v247
    %v511 = vunpack.c.l.b16 %v248
    %v512 = vunpack.c.l.b16 %v249
    %v513 = vunpack.c.l.b16 %v250
    %v514 = vunpack.c.l.b16 %v251
    %v515 = vunpack.c.l.b16 %v252
    %v516 = vunpack.c.l.b16 %v253
    %v517 = vunpack.c.l.b16 %v254
    %v518 = vunpack.c.l.b16 %v255
    %v519 = vunpack.c.l.b16 %v256
    %v520 = vunpack.c.l.b16 %v257
    %v521 = vunpack.c.l.b16 %v258
    %v522 = vunpack.c.l.b16 %v259
    %v523 = vunpack.c.l.b16 %v260
    %v524 = vunpack.c.l.b16 %v261
    %v525 = vunpack.c.l.b16 %v262
    %v526 = vunpack.c.l.b16 %v263
    %v527 = vunpack.c.l.b16 %v264
    %v528 = vunpack.c.l.b16 %v265
    %v529 = vunpack.c.l.b16 %v266
    %v530 = vunpack.c.l.b16 %v267
    %v531 = vunpack.c.l.b16 %v268
    %v532 = vunpack.c.l.b16 %v269
    %v533 = vunpack.c.l.b16 %v270
    %v534 = vunpack.c.l.b16 %v271
    %v535 = vunpack.c.l.b16 %v272
    %v536 = vunpack.c.l.b16 %v273
    %v537 = vunpack.c.l.b16 %v274
    %v538 = vunpack.c.l.b16 %v275
    %v539 = vunpack.c.l.b16 %v276
    %v540 = vunpack.c.l.b16 %v277
    %v541 = vunpack.c.l.b16 %v278
    %v542 = vunpack.c.l.b16 %v279
    %v543 = vunpack.c.l.b16 %v280
    %v544 = vunpack.c.l.b16 %v281
    %v545 = vunpack.c.l.b16 %v282
    %v546 = vunpack.c.l.b16 %v283
    %v547 = vunpack.c.l.b16 %v284
    %v548 = vunpack.c.l.b16 %v285
    %v549 = vunpack.c.l.b16 %v286
    %v550 = vunpack.c.l.b16 %v287
    %v551 = vunpack.c.l.b16 %v288
    %v552 = vunpack.c.l.b16 %v289
    %v553 = vunpack.c.l.b16 %v290
    %v554 = vunpack.c.l.b16 %v291
    %v555 = vunpack.c.l.b16 %v292
    %v556 = vunpack.c.l.b16 %v293
    %v557 = vunpack.c.l.b16 %v294
    %v558 = vunpack.c.l.b16 %v295
    %v559 = vunpack.c.l.b16 %v296
    %v560 = vunpack.c.l.b16 %v297
    %v561 = vunpack.c.l.b16 %v298
    %v562 = vunpack.c.l.b16 %v299
    %v563 = vunpack.c.l.b16 %v300
    %v564 = vunpack.c.l.b16 %v301
    %v565 = vunpack.c.l.b16 %v302
    %v566 = vunpack.c.l.b16 %v303
    %v567 = vunpack.c.l.b16 %v304
    %v568 = vunpack.c.l.b16 %v305
    %v569 = vunpack.c.l.b16 %v306
    %v570 = vunpack.c.l.b16 %v307
    %v571 = vunpack.c.l.b16 %v308
    %v572 = vunpack.c.l.b16 %v309
    %v573 = vunpack.c.l.b16 %v310
    %v574 = vunpack.c.l.b16 %v311
    %v575 = vunpack.c.l.b16 %v312
    %v576 = vunpack.c.l.b16 %v313
    %v577 = vunpack.c.l.b16 %v314
    %v578 = vunpack.c.l.b16 %v315
    %v579 = vunpack.c.l.b16 %v316
    %v580 = vunpack.c.l.b16 %v317
    %v581 = vunpack.c.l.b16 %v318
    %v582 = vunpack.c.l.b16 %v319
    %v583 = vunpack.c.l.b16 %v320
    %v584 = vunpack.c.l.b16 %v321
    %v585 = vunpack.c.l.b16 %v322
    %v586 = vunpack.c.l.b16 %v323
    %v587 = vunpack.c.l.b16 %v324
    %v588 = vunpack.c.l.b16 %v325
    %v589 = vunpack.c.l.b16 %v326
    %v590 = vunpack.c.l.b16 %v327
    %v591 = vunpack.c.l.b16 %v328
    %v592 = vunpack.c.l.b16 %v329
    %v593 = vunpack.c.l.b16 %v330
    %v594 = vunpack.c.l.b16 %v331
    %v595 = vunpack.c.l.b16 %v332
    %v596 = vunpack.c.l.b16 %v333
    %v597 = vunpack.c.l.b16 %v334
    %v598 = vunpack.c.l.b16 %v335
    %v599 = vunpack.c.l.b16 %v336
    %v600 = vunpack.c.l.b16 %v337
    %v601 = vunpack.c.l.b16 %v338
    %v602 = vunpack.c.l.b16 %v339
    %v603 = vunpack.c.l.b16 %v340
    %v604 = vunpack.c.l.b16 %v341
    %v605 = vunpack.c.l.b16 %v342
    %v606 = vunpack.c.l.b16 %v343
    %v607 = vunpack.c.l.b16 %v344
    %v608 = vunpack.c.l.b16 %v345
    %v609 = vunpack.c.l.b16 %v346
    %v610 = vunpack.c.l.b16 %v347
    %v611 = vunpack.c.l.b16 %v348
    %v612 = vunpack.c.l.b16 %v349
    %v613 = vpack.c.b16 %v486, %v485
    %v614 = vpack.c.b16 %v488, %v487
    %v615 = vpack.c.b16 %v490, %v489
    %v616 = vpack.c.b16 %v492, %v491
    %v617 = vpack.c.b16 %v494, %v493
    %v618 = vpack.c.b16 %v496, %v495
    %v619 = vpack.c.b16 %v498, %v497
    %v620 = vpack.c.b16 %v500, %v499
    %v621 = vpack.c.b16 %v502, %v501
    %v622 = vpack.c.b16 %v504, %v503
    %v623 = vpack.c.b16 %v506, %v505
    %v624 = vpack.c.b16 %v508, %v507
    %v625 = vpack.c.b16 %v510, %v509
    %v626 = vpack.c.b16 %v512, %v511
    %v627 = vpack.c.b16 %v514, %v513
    %v628 = vpack.c.b16 %v516, %v515
    %v629 = vpack.c.b16 %v518, %v517
    %v630 = vpack.c.b16 %v520, %v519
    %v631 = vpack.c.b16 %v522, %v521
    %v632 = vpack.c.b16 %v524, %v523
    %v633 = vpack.c.b16 %v526, %v525
    %v634 = vpack.c.b16 %v528, %v527
    %v635 = vpack.c.b16 %v530, %v529
    %v636 = vpack.c.b16 %v532, %v531
    %v637 = vpack.c.b16 %v534, %v533
    %v638 = vpack.c.b16 %v536, %v535
    %v639 = vpack.c.b16 %v538, %v537
    %v640 = vpack.c.b16 %v540, %v539
    %v641 = vpack.c.b16 %v542, %v541
    %v642 = vpack.c.b16 %v544, %v543
    %v643 = vpack.c.b16 %v546, %v545
    %v644 = vpack.c.b16 %v548, %v547
    %v645 = vpack.c.b16 %v550, %v549
    %v646 = vpack.c.b16 %v552, %v551
    %v647 = vpack.c.b16 %v554, %v553
    %v648 = vpack.c.b16 %v556, %v555
    %v649 = vpack.c.b16 %v558, %v557
    %v650 = vpack.c.b16 %v560, %v559
    %v651 = vpack.c.b16 %v562, %v561
    %v652 = vpack.c.b16 %v564, %v563
    %v653 = vpack.c.b16 %v566, %v565
    %v654 = vpack.c.b16 %v568, %v567
    %v655 = vpack.c.b16 %v570, %v569
    %v656 = vpack.c.b16 %v572, %v571
    %v657 = vpack.c.b16 %v574, %v573
    %v658 = vpack.c.b16 %v576, %v575
    %v659 = vpack.c.b16 %v578, %v577
    %v660 = vpack.c.b16 %v580, %v579
    %v661 = vpack.c.b16 %v582, %v581
    %v662 = vpack.c.b16 %v584, %v583
    %v663 = vpack.c.b16 %v586, %v585
    %v664 = vpack.c.b16 %v588, %v587
    %v665 = vpack.c.b16 %v590, %v589
    %v666 = vpack.c.b16 %v592, %v591
    %v667 = vpack.c.b16 %v594, %v593
    %v668 = vpack.c.b16 %v596, %v595
    %v669 = vpack.c.b16 %v598, %v597
    %v670 = vpack.c.b16 %v600, %v599
    %v671 = vpack.c.b16 %v602, %v601
    %v672 = vpack.c.b16 %v604, %v603
    %v673 = vpack.c.b16 %v606, %v605
    %v674 = vpack.c.b16 %v608, %v607
    %v675 = vpack.c.b16 %v610, %v609
    %v676 = vpack.c.b16 %v612, %v611
    %741 = vmatprep.subr.bf16.mxu0 0
    %742 = vmatpush1.bf16.msra.mxu0 %v620
    %743 = vmatprep.subr.bf16.mxu0 0
    %744 = vmatpush1.bf16.msra.mxu0 %v619
    %745 = vmatprep.subr.bf16.mxu0 0
    %746 = vmatpush1.bf16.msra.mxu0 %v618
    %747 = vmatprep.subr.bf16.mxu0 0
    %748 = vmatpush1.bf16.msra.mxu0 %v617
    %749 = vmatprep.subr.bf16.mxu0 0
    %750 = vmatpush1.bf16.msra.mxu0 %v616
    %751 = vmatprep.subr.bf16.mxu0 0
    %752 = vmatpush1.bf16.msra.mxu0 %v615
    %753 = vmatprep.subr.bf16.mxu0 0
    %754 = vmatpush1.bf16.msra.mxu0 %v614
    %755 = vmatprep.subr.bf16.mxu0 0
    %756 = vmatpush1.bf16.msra.mxu0 %v613
    %757 = vmatprep.subr.bf16.mxu0 0
    %758 = vmatpush2.bf16.msra.mxu0 %v628
    %759 = vmatprep.subr.bf16.mxu0 0
    %760 = vmatpush2.bf16.msra.mxu0 %v627
    %761 = vmatprep.subr.bf16.mxu0 0
    %762 = vmatpush2.bf16.msra.mxu0 %v626
    %763 = vmatprep.subr.bf16.mxu0 0
    %764 = vmatpush2.bf16.msra.mxu0 %v625
    %765 = vmatprep.subr.bf16.mxu0 0
    %766 = vmatpush2.bf16.msra.mxu0 %v624
    %767 = vmatprep.subr.bf16.mxu0 0
    %768 = vmatpush2.bf16.msra.mxu0 %v623
    %769 = vmatprep.subr.bf16.mxu0 0
    %770 = vmatpush2.bf16.msra.mxu0 %v622
    %771 = vmatprep.subr.bf16.mxu0 0
    %772 = vmatpush2.bf16.msra.mxu0 %v621
    %773 = vmatprep.mubr.bf16.mxu0 %v215
    %774 = vmatmul.mubr.bf16.gmra.mxu0 %v214
    %v775 = vpop.f32.mrf.mxu0
    %v776 = vadd.f32 %v355, %v775
    %v777 = vpop.f32.mrf.mxu0
    %v778 = vpop.f32.mrf.mxu0
    %v779 = vadd.f32 %v355, %v778
    %v780 = vpop.f32.mrf.mxu0
    %781 = vdwg.mxu0
    %782 = vmatprep.subr.bf16.mxu0 0
    %783 = vmatpush1.bf16.msra.mxu0 %v636
    %784 = vmatprep.subr.bf16.mxu0 0
    %785 = vmatpush1.bf16.msra.mxu0 %v635
    %786 = vmatprep.subr.bf16.mxu0 0
    %787 = vmatpush1.bf16.msra.mxu0 %v634
    %788 = vmatprep.subr.bf16.mxu0 0
    %789 = vmatpush1.bf16.msra.mxu0 %v633
    %790 = vmatprep.subr.bf16.mxu0 0
    %791 = vmatpush1.bf16.msra.mxu0 %v632
    %792 = vmatprep.subr.bf16.mxu0 0
    %793 = vmatpush1.bf16.msra.mxu0 %v631
    %794 = vmatprep.subr.bf16.mxu0 0
    %795 = vmatpush1.bf16.msra.mxu0 %v630
    %796 = vmatprep.subr.bf16.mxu0 0
    %797 = vmatpush1.bf16.msra.mxu0 %v629
    %798 = vmatprep.subr.bf16.mxu0 0
    %799 = vmatpush2.bf16.msra.mxu0 %v644
    %800 = vmatprep.subr.bf16.mxu0 0
    %801 = vmatpush2.bf16.msra.mxu0 %v643
    %802 = vmatprep.subr.bf16.mxu0 0
    %803 = vmatpush2.bf16.msra.mxu0 %v642
    %804 = vmatprep.subr.bf16.mxu0 0
    %805 = vmatpush2.bf16.msra.mxu0 %v641
    %806 = vmatprep.subr.bf16.mxu0 0
    %807 = vmatpush2.bf16.msra.mxu0 %v640
    %808 = vmatprep.subr.bf16.mxu0 0
    %809 = vmatpush2.bf16.msra.mxu0 %v639
    %810 = vmatprep.subr.bf16.mxu0 0
    %811 = vmatpush2.bf16.msra.mxu0 %v638
    %812 = vmatprep.subr.bf16.mxu0 0
    %813 = vmatpush2.bf16.msra.mxu0 %v637
    %814 = vmatprep.mubr.bf16.mxu0 %v217
    %815 = vmatmul.mubr.bf16.gmra.mxu0 %v216
    %v816 = vpop.f32.mrf.mxu0
    %v817 = vadd.f32 %v776, %v816
    %v818 = vpop.f32.mrf.mxu0
    %v819 = vpop.f32.mrf.mxu0
    %v820 = vadd.f32 %v779, %v819
    %v821 = vpop.f32.mrf.mxu0
    %822 = vdwg.mxu0
    %823 = vmatprep.subr.bf16.mxu0 0
    %824 = vmatpush1.bf16.msra.mxu0 %v652
    %825 = vmatprep.subr.bf16.mxu0 0
    %826 = vmatpush1.bf16.msra.mxu0 %v651
    %827 = vmatprep.subr.bf16.mxu0 0
    %828 = vmatpush1.bf16.msra.mxu0 %v650
    %829 = vmatprep.subr.bf16.mxu0 0
    %830 = vmatpush1.bf16.msra.mxu0 %v649
    %831 = vmatprep.subr.bf16.mxu0 0
    %832 = vmatpush1.bf16.msra.mxu0 %v648
    %833 = vmatprep.subr.bf16.mxu0 0
    %834 = vmatpush1.bf16.msra.mxu0 %v647
    %835 = vmatprep.subr.bf16.mxu0 0
    %836 = vmatpush1.bf16.msra.mxu0 %v646
    %837 = vmatprep.subr.bf16.mxu0 0
    %838 = vmatpush1.bf16.msra.mxu0 %v645
    %839 = vmatprep.subr.bf16.mxu0 0
    %840 = vmatpush2.bf16.msra.mxu0 %v660
    %841 = vmatprep.subr.bf16.mxu0 0
    %842 = vmatpush2.bf16.msra.mxu0 %v659
    %843 = vmatprep.subr.bf16.mxu0 0
    %844 = vmatpush2.bf16.msra.mxu0 %v658
    %845 = vmatprep.subr.bf16.mxu0 0
    %846 = vmatpush2.bf16.msra.mxu0 %v657
    %847 = vmatprep.subr.bf16.mxu0 0
    %848 = vmatpush2.bf16.msra.mxu0 %v656
    %849 = vmatprep.subr.bf16.mxu0 0
    %850 = vmatpush2.bf16.msra.mxu0 %v655
    %851 = vmatprep.subr.bf16.mxu0 0
    %852 = vmatpush2.bf16.msra.mxu0 %v654
    %853 = vmatprep.subr.bf16.mxu0 0
    %854 = vmatpush2.bf16.msra.mxu0 %v653
    %855 = vmatprep.mubr.bf16.mxu0 %v219
    %856 = vmatmul.mubr.bf16.gmra.mxu0 %v218
    %v857 = vpop.f32.mrf.mxu0
    %v858 = vadd.f32 %v817, %v857
    %v859 = vpop.f32.mrf.mxu0
    %v860 = vpop.f32.mrf.mxu0
    %v861 = vadd.f32 %v820, %v860
    %v862 = vpop.f32.mrf.mxu0
    %863 = vdwg.mxu0
    %864 = vmatprep.subr.bf16.mxu0 0
    %865 = vmatpush1.bf16.msra.mxu0 %v668
    %866 = vmatprep.subr.bf16.mxu0 0
    %867 = vmatpush1.bf16.msra.mxu0 %v667
    %868 = vmatprep.subr.bf16.mxu0 0
    %869 = vmatpush1.bf16.msra.mxu0 %v666
    %870 = vmatprep.subr.bf16.mxu0 0
    %871 = vmatpush1.bf16.msra.mxu0 %v665
    %872 = vmatprep.subr.bf16.mxu0 0
    %873 = vmatpush1.bf16.msra.mxu0 %v664
    %874 = vmatprep.subr.bf16.mxu0 0
    %875 = vmatpush1.bf16.msra.mxu0 %v663
    %876 = vmatprep.subr.bf16.mxu0 0
    %877 = vmatpush1.bf16.msra.mxu0 %v662
    %878 = vmatprep.subr.bf16.mxu0 0
    %879 = vmatpush1.bf16.msra.mxu0 %v661
    %880 = vmatprep.subr.bf16.mxu0 0
    %881 = vmatpush2.bf16.msra.mxu0 %v676
    %882 = vmatprep.subr.bf16.mxu0 0
    %883 = vmatpush2.bf16.msra.mxu0 %v675
    %884 = vmatprep.subr.bf16.mxu0 0
    %885 = vmatpush2.bf16.msra.mxu0 %v674
    %886 = vmatprep.subr.bf16.mxu0 0
    %887 = vmatpush2.bf16.msra.mxu0 %v673
    %888 = vmatprep.subr.bf16.mxu0 0
    %889 = vmatpush2.bf16.msra.mxu0 %v672
    %890 = vmatprep.subr.bf16.mxu0 0
    %891 = vmatpush2.bf16.msra.mxu0 %v671
    %892 = vmatprep.subr.bf16.mxu0 0
    %893 = vmatpush2.bf16.msra.mxu0 %v670
    %894 = vmatprep.subr.bf16.mxu0 0
    %895 = vmatpush2.bf16.msra.mxu0 %v669
    %896 = vmatprep.mubr.bf16.mxu0 %v221
    %897 = vmatmul.mubr.bf16.gmra.mxu0 %v220
    %v898 = vpop.f32.mrf.mxu0
    %v899 = vadd.f32 %v858, %v898
    %v900 = vpop.f32.mrf.mxu0
    %v901 = vpop.f32.mrf.mxu0
    %v902 = vadd.f32 %v861, %v901
    %v903 = vpop.f32.mrf.mxu0
    %904 = vdwg.mxu0
    %vm905 = vcmp.gt.f32.partialorder %v899, 20.0
    %vm906 = vcmp.gt.f32.partialorder %v902, 20.0
    %v907 = vmin.f32 %v899, 20.0
    %v908 = vmin.f32 %v902, 20.0
    %v909 = vmul.f32 %v907, 1.442695
    %v910 = vpow.pop %v909
    %v911 = vmul.f32 %v908, 1.442695
    %v912 = vpow.pop %v911
    %v913 = vadd.f32 %v910, 1.0
    %v914 = vlog2.pop %v913
    %v915 = vmul.f32 %v914, 0.6931472
    %v916 = vmul.f32 -0.5, %v910
    %v917 = vadd.f32 %v916, 1.0
    %v918 = vmul.f32 %v917, %v910
    %v919 = vand.u32 2147483647, %v910
    %vm920 = vcmp.lt.f32.partialorder %v919, 0.0004427343
    %v921 = vsel %vm920, %v918, %v915
    %v922 = vadd.f32 %v912, 1.0
    %v923 = vlog2.pop %v922
    %v924 = vmul.f32 %v923, 0.6931472
    %v925 = vmul.f32 -0.5, %v912
    %v926 = vadd.f32 %v925, 1.0
    %v927 = vmul.f32 %v926, %v912
    %v928 = vand.u32 2147483647, %v912
    %vm929 = vcmp.lt.f32.partialorder %v928, 0.0004427343
    %v930 = vsel %vm929, %v927, %v924
    %v931 = vsel %vm905, %v899, %v921
    %v932 = vsel %vm906, %v902, %v930
    %v933 = vpack.c.bf16 %v932, %v931
    %v934 = vld [vmem:[%s3] sm:$0xf]
    %v935 = vld [vmem:[%s3 + $0x4] sm:$0xf]
    %v936 = vld [vmem:[%s3 + $0x8] sm:$0xf]
    %v937 = vld [vmem:[%s3 + $0xc] sm:$0xf]
    %v938 = vld [vmem:[%s4] sm:$0x1]
    %v940 = vlaneseq
    %v941 = vshrl.u32 %v940, 7
    %v942 = vsub.s32 0, %v941
    %v943 = vrot.slane %v938, %v942
    %v949 = vunpack.c.l.b16 %v934
    %v950 = vunpack.c.l.b16 %v935
    %v951 = vunpack.c.l.b16 %v936
    %v952 = vunpack.c.l.b16 %v937
    %v953 = vpack.c.b16 %v950, %v949
    %v954 = vpack.c.b16 %v952, %v951
    %vm957 = vcmask 261120
    %v959 = vsel %vm957, %v933, 0
    %961 = vmatprep.subr.bf16.mxu0 0
    %962 = vmatpush1.bf16.msra.mxu0 0
    %963 = vmatprep.subr.bf16.mxu0 0
    %964 = vmatpush1.bf16.msra.mxu0 0
    %965 = vmatprep.subr.bf16.mxu0 0
    %966 = vmatpush1.bf16.msra.mxu0 0
    %967 = vmatprep.subr.bf16.mxu0 0
    %968 = vmatpush1.bf16.msra.mxu0 0
    %969 = vmatprep.subr.bf16.mxu0 0
    %970 = vmatpush1.bf16.msra.mxu0 0
    %971 = vmatprep.subr.bf16.mxu0 0
    %972 = vmatpush1.bf16.msra.mxu0 0
    %973 = vmatprep.subr.bf16.mxu0 0
    %974 = vmatpush1.bf16.msra.mxu0 %v954
    %975 = vmatprep.subr.bf16.mxu0 0
    %976 = vmatpush1.bf16.msra.mxu0 %v953
    %977 = vmatprep.subr.bf16.mxu0 0
    %978 = vmatpush2.bf16.msra.mxu0 0
    %979 = vmatprep.subr.bf16.mxu0 0
    %980 = vmatpush2.bf16.msra.mxu0 0
    %981 = vmatprep.subr.bf16.mxu0 0
    %982 = vmatpush2.bf16.msra.mxu0 0
    %983 = vmatprep.subr.bf16.mxu0 0
    %984 = vmatpush2.bf16.msra.mxu0 0
    %985 = vmatprep.subr.bf16.mxu0 0
    %986 = vmatpush2.bf16.msra.mxu0 0
    %987 = vmatprep.subr.bf16.mxu0 0
    %988 = vmatpush2.bf16.msra.mxu0 0
    %989 = vmatprep.subr.bf16.mxu0 0
    %990 = vmatpush2.bf16.msra.mxu0 0
    %991 = vmatprep.subr.bf16.mxu0 0
    %992 = vmatpush2.bf16.msra.mxu0 0
    %993 = vmatprep.mubr.bf16.mxu0 0
    %994 = vmatmul.mubr.bf16.gmra.mxu0 %v959
    %v995 = vpop.f32.mrf.mxu0
    %v996 = vadd.f32 %v943, %v995
    %v997 = vpop.f32.mrf.mxu0
    %v998 = vpop.f32.mrf.mxu0
    %v999 = vadd.f32 %v943, %v998
    %v1000 = vpop.f32.mrf.mxu0
    %1001 = vdwg.mxu0
    %v1002 = vlaneseq
    %v1003 = vand.u32 %v1002, 127
    %vm1004 = vcmp.lt.s32.totalorder %v1003, 8
    %v1005 = vmul.f32 %v996, 1.442695
    %v1006 = vpow.pop %v1005
    %v1007 = vmul.f32 %v999, 1.442695
    %v1008 = vpow.pop %v1007
    %v1009 = vsel %vm1004, %v996, %v1006
    %v1010 = vsel %vm1004, %v999, %v1008
    %vm1011 = vcmask 130048
    %1012 = vst.msk [vmem:[#allocation2] sm:$0xff] %vm1011, %v1009
    %1013 = vst.msk [vmem:[#allocation2 + $0x8] sm:$0xff] %vm1011, %v1010
    // Predicated region
    $region22: #{tpu_custom_call.1} parent=1 // pred_check
      _
    $region23: #{tpu_custom_call.1} parent=1 // pred_check_branch
      %1015 = sbr.rel (0) target = $region25
    $region24: #{tpu_custom_call.1} parent=1 // pred_region
      %s1017 = ssub.s32 256, 32
      %1018 = vsyncadd [#allocation3], %s1017
      %s1019 = sshll.u32 [#allocation2], 4
      %s1020 = int_to_ptr.vmem [resolvable:$true] %s1019
      %1025 = dma.vmem_to_hbm [thread:$0]  %s1020, 32, %s5, [#allocation3], 32, 32, 2
    $region25: #{tpu_custom_call.1} parent=1 // pred_fallthru
      _
    // Predicated region
    $region26: #{tpu_custom_call.1} parent=1 // pred_check
      _
    $region27: #{tpu_custom_call.1} parent=1 // pred_check_branch
      %1027 = sbr.rel (0) target = $region29
    $region28: #{tpu_custom_call.1} parent=1 // pred_region
      %1028 = dma.done [#allocation3], 256
    $region29: #{tpu_custom_call.1} parent=1 // pred_fallthru
      _
    %1029 = vsyncpa [#allocation3], 1

</llo_original>
